<compile_context>
chip_gen: v5e
topology: v5e:2x2
jax: 0.10.0
libtpu: 0.0.40
codegen_flags: <defaults>
</compile_context>

<pallas_src>
import jax
import jax.numpy as jnp
from jax.experimental import pallas as pl
from jax.experimental.pallas import tpu as pltpu

FC1_DIMS = 256
FC2_DIMS = 256


def value_net_kernel(x_ref, w1_ref, b1_ref, w2_ref, b2_ref, w3_ref, b3_ref, o_ref):
    # fc1 + relu  (bf16 operands -> MXU, f32 accumulate, f32 bias/relu on VPU)
    h1 = jnp.dot(
        x_ref[...].astype(jnp.bfloat16), w1_ref[...],
        preferred_element_type=jnp.float32,
    )
    h1 = jnp.maximum(h1 + b1_ref[...], 0.0)

    # fc2 + relu
    h2 = jnp.dot(
        h1.astype(jnp.bfloat16), w2_ref[...],
        preferred_element_type=jnp.float32,
    )
    h2 = jnp.maximum(h2 + b2_ref[...], 0.0)

    # v head: 256 -> 1 as broadcast-multiply (VPU) + lane reduction (XLU).
    v = jnp.sum(h2 * w3_ref[...], axis=-1, keepdims=True)
    o_ref[...] = v + b3_ref[...]


def value_network_forward(state, params, *, tb=128):
    """state: [B, D] float32. Returns [B, 1] float32."""
    w1, b1, w2, b2, w3, b3 = params
    B, D = state.shape

    # Pick a batch tile. If the batch fits in one tile, use the full batch
    # (block == full array extent is always legal, no (8,128) constraint).
    # Otherwise pad B up to a multiple of tb so the grid is exact; padded rows
    # are computed on zeros and discarded at the end.
    if B <= tb:
        TB = B
        B_pad = B
        state_p = state
    else:
        TB = tb
        B_pad = pl.cdiv(B, TB) * TB
        state_p = (
            state if B_pad == B
            else jnp.pad(state, ((0, B_pad - B), (0, 0)))
        )
    n_tiles = B_pad // TB

    flops = 2 * B_pad * (D * FC1_DIMS + FC1_DIMS * FC2_DIMS + FC2_DIMS)
    bytes_accessed = (
        state_p.size * 4 + w1.size * 2 + w2.size * 2
        + (b1.size + b2.size + w3.size + b3.size) * 4 + B_pad * 4
    )

    out = pl.pallas_call(
        value_net_kernel,
        out_shape=jax.ShapeDtypeStruct((B_pad, 1), jnp.float32),
        grid_spec=pltpu.PrefetchScalarGridSpec(
            num_scalar_prefetch=0,
            grid=(n_tiles,),
            in_specs=[
                pl.BlockSpec((TB, D), lambda i: (i, 0)),               # state tile
                pl.BlockSpec((D, FC1_DIMS), lambda i: (0, 0)),         # w1 (VMEM-resident)
                pl.BlockSpec((1, FC1_DIMS), lambda i: (0, 0)),         # b1
                pl.BlockSpec((FC1_DIMS, FC2_DIMS), lambda i: (0, 0)),  # w2 (VMEM-resident)
                pl.BlockSpec((1, FC2_DIMS), lambda i: (0, 0)),         # b2
                pl.BlockSpec((1, FC2_DIMS), lambda i: (0, 0)),         # w3 row vector
                pl.BlockSpec((1, 1), lambda i: (0, 0)),                # b3 scalar
            ],
            out_specs=pl.BlockSpec((TB, 1), lambda i: (i, 0)),
        ),
        compiler_params=pltpu.CompilerParams(
            dimension_semantics=("parallel",),
        ),
        cost_estimate=pl.CostEstimate(
            flops=int(flops), transcendentals=0,
            bytes_accessed=int(bytes_accessed)),
    )(state_p, w1, b1, w2, b2, w3, b3)

    return out[:B, :]


def init_params(key, input_dims):
    """Deterministic init mirroring nn.Linear default (uniform +/- 1/sqrt(fan_in)).

    fc1/fc2 weights stored as bf16 [in, out] (transposed vs. torch's [out, in]);
    the 256 -> 1 head is stored as an f32 row vector [1, FC2_DIMS]."""
    k = jax.random.split(key, 6)

    def lin(kw, kb, fan_in, fan_out):
        bound = 1.0 / jnp.sqrt(fan_in)
        w = jax.random.uniform(kw, (fan_in, fan_out), jnp.float32, -bound, bound)
        b = jax.random.uniform(kb, (1, fan_out), jnp.float32, -bound, bound)
        return w, b

    w1, b1 = lin(k[0], k[1], input_dims, FC1_DIMS)
    w2, b2 = lin(k[2], k[3], FC1_DIMS, FC2_DIMS)
    w3, b3 = lin(k[4], k[5], FC2_DIMS, 1)

    w1 = w1.astype(jnp.bfloat16)
    w2 = w2.astype(jnp.bfloat16)
    w3 = w3.reshape(1, FC2_DIMS)          # row vector for the reduce-head
    b3 = b3.reshape(1, 1)
    return (w1, b1, w2, b2, w3, b3)


def reference_forward(state, params):
    """Pure-JAX reference mirroring the kernel numerics (bf16 MXU operands, f32 acc)."""
    w1, b1, w2, b2, w3, b3 = params
    h1 = jnp.dot(state.astype(jnp.bfloat16), w1, preferred_element_type=jnp.float32)
    h1 = jnp.maximum(h1 + b1, 0.0)
    h2 = jnp.dot(h1.astype(jnp.bfloat16), w2, preferred_element_type=jnp.float32)
    h2 = jnp.maximum(h2 + b2, 0.0)
    return jnp.sum(h2 * w3, axis=-1, keepdims=True) + b3


if __name__ == "__main__":
    key = jax.random.PRNGKey(0)
    k_state, k_params = jax.random.split(key)

    B = 256          # batch: two 128-row tiles -> exercises the grid pipeline
    INPUT_DIMS = 8   # small env observation vector (*input_dims)

    state = jax.random.normal(k_state, (B, INPUT_DIMS), jnp.float32)
    params = init_params(k_params, INPUT_DIMS)

    v = value_network_forward(state, params)
    jax.block_until_ready(v)

    v_ref = reference_forward(state, params)
    assert v.shape == (B, 1), v.shape
    assert jnp.allclose(v, v_ref, atol=2e-3, rtol=2e-3), (v, v_ref)

    # Also exercise the single-tile (B <= tb) path used for tiny eval batches.
    v_small = value_network_forward(state[:4], params)
    jax.block_until_ready(v_small)
    assert v_small.shape == (4, 1)
    assert jnp.allclose(v_small, v_ref[:4], atol=2e-3, rtol=2e-3)

    print("KERNEL_OK")
</pallas_src>

<mosaic_0001>
module attributes {stable_mosaic.version = 11 : i64} {
  func.func @value_net_kernel(%arg0: i32, %arg1: memref<128x8xf32, #tpu.memory_space<vmem>>, %arg2: memref<8x256xbf16, #tpu.memory_space<vmem>>, %arg3: memref<1x256xf32, #tpu.memory_space<vmem>>, %arg4: memref<256x256xbf16, #tpu.memory_space<vmem>>, %arg5: memref<1x256xf32, #tpu.memory_space<vmem>>, %arg6: memref<1x256xf32, #tpu.memory_space<vmem>>, %arg7: memref<1x1xf32, #tpu.memory_space<vmem>>, %arg8: memref<128x1xf32, #tpu.memory_space<vmem>>) attributes {dimension_semantics = [#tpu.dimension_semantics<parallel>], iteration_bounds = array<i64: 2>, scalar_prefetch = 0 : i64, scratch_operands = 0 : i64, tpu.core_type = #tpu.core_type<tc>, window_params = [{transform_indices = @transform_0, window_bounds = array<i64: 128, 8>}, {pipeline_mode = #tpu.pipeline_mode<synchronous>, transform_indices = @transform_1, window_bounds = array<i64: 8, 256>}, {pipeline_mode = #tpu.pipeline_mode<synchronous>, transform_indices = @transform_2, window_bounds = array<i64: 1, 256>}, {pipeline_mode = #tpu.pipeline_mode<synchronous>, transform_indices = @transform_3, window_bounds = array<i64: 256, 256>}, {pipeline_mode = #tpu.pipeline_mode<synchronous>, transform_indices = @transform_4, window_bounds = array<i64: 1, 256>}, {pipeline_mode = #tpu.pipeline_mode<synchronous>, transform_indices = @transform_5, window_bounds = array<i64: 1, 256>}, {pipeline_mode = #tpu.pipeline_mode<synchronous>, transform_indices = @transform_6, window_bounds = array<i64: 1, 1>}, {transform_indices = @transform_7, window_bounds = array<i64: 128, 1>}]} {
    %c0 = arith.constant 0 : index
    %c0_0 = arith.constant 0 : index
    %0 = vector.load %arg1[%c0, %c0_0] : memref<128x8xf32, #tpu.memory_space<vmem>>, vector<128x8xf32>
    %1 = arith.truncf %0 : vector<128x8xf32> to vector<128x8xbf16>
    %c0_1 = arith.constant 0 : index
    %c0_2 = arith.constant 0 : index
    %2 = vector.load %arg2[%c0_1, %c0_2] : memref<8x256xbf16, #tpu.memory_space<vmem>>, vector<8x256xbf16>
    %cst = arith.constant dense<0.000000e+00> : vector<128x256xf32>
    %3 = tpu.matmul %1, %2, %cst {dimension_numbers = #tpu.dot_dimension_numbers<[1], [0], [0], [1], [0, 0, 1, 1], [], []>} : vector<128x8xbf16>, vector<8x256xbf16>, vector<128x256xf32> -> vector<128x256xf32>
    %c0_3 = arith.constant 0 : index
    %c0_4 = arith.constant 0 : index
    %4 = vector.load %arg3[%c0_3, %c0_4] : memref<1x256xf32, #tpu.memory_space<vmem>>, vector<1x256xf32>
    %5 = vector.broadcast %4 : vector<1x256xf32> to vector<128x256xf32>
    %6 = arith.addf %3, %5 : vector<128x256xf32>
    %cst_5 = arith.constant 0.000000e+00 : f32
    %7 = vector.broadcast %cst_5 : f32 to vector<128x256xf32>
    %8 = arith.maximumf %6, %7 : vector<128x256xf32>
    %9 = arith.truncf %8 : vector<128x256xf32> to vector<128x256xbf16>
    %c0_6 = arith.constant 0 : index
    %c0_7 = arith.constant 0 : index
    %10 = vector.load %arg4[%c0_6, %c0_7] : memref<256x256xbf16, #tpu.memory_space<vmem>>, vector<256x256xbf16>
    %cst_8 = arith.constant dense<0.000000e+00> : vector<128x256xf32>
    %11 = tpu.matmul %9, %10, %cst_8 {dimension_numbers = #tpu.dot_dimension_numbers<[1], [0], [0], [1], [0, 0, 1, 1], [], []>} : vector<128x256xbf16>, vector<256x256xbf16>, vector<128x256xf32> -> vector<128x256xf32>
    %c0_9 = arith.constant 0 : index
    %c0_10 = arith.constant 0 : index
    %12 = vector.load %arg5[%c0_9, %c0_10] : memref<1x256xf32, #tpu.memory_space<vmem>>, vector<1x256xf32>
    %13 = vector.broadcast %12 : vector<1x256xf32> to vector<128x256xf32>
    %14 = arith.addf %11, %13 : vector<128x256xf32>
    %cst_11 = arith.constant 0.000000e+00 : f32
    %15 = vector.broadcast %cst_11 : f32 to vector<128x256xf32>
    %16 = arith.maximumf %14, %15 : vector<128x256xf32>
    %c0_12 = arith.constant 0 : index
    %c0_13 = arith.constant 0 : index
    %17 = vector.load %arg6[%c0_12, %c0_13] : memref<1x256xf32, #tpu.memory_space<vmem>>, vector<1x256xf32>
    %18 = vector.broadcast %17 : vector<1x256xf32> to vector<128x256xf32>
    %19 = arith.mulf %16, %18 : vector<128x256xf32>
    %cst_14 = arith.constant dense<0.000000e+00> : vector<128xf32>
    %20 = vector.multi_reduction <add>, %19, %cst_14 [1] : vector<128x256xf32> to vector<128xf32>
    %21 = vector.shape_cast %20 : vector<128xf32> to vector<128x1xf32>
    %c0_15 = arith.constant 0 : index
    %c0_16 = arith.constant 0 : index
    %22 = vector.load %arg7[%c0_15, %c0_16] : memref<1x1xf32, #tpu.memory_space<vmem>>, vector<1x1xf32>
    %23 = vector.broadcast %22 : vector<1x1xf32> to vector<128x1xf32>
    %24 = arith.addf %21, %23 : vector<128x1xf32>
    %c0_17 = arith.constant 0 : index
    %c0_18 = arith.constant 0 : index
    %25 = vector.load %arg8[%c0_17, %c0_18] : memref<128x1xf32, #tpu.memory_space<vmem>>, vector<128x1xf32>
    tpu.vector_store %arg8[%c0_17, %c0_18], %24 {strides = array<i32>} : memref<128x1xf32, #tpu.memory_space<vmem>>, vector<128x1xf32>,
    return
  }
  func.func @transform_0(%arg0: i32) -> (i32, i32) {
    %c0_i32 = arith.constant 0 : i32
    %c0_i32_0 = arith.constant 0 : i32
    return %arg0, %c0_i32 : i32, i32
  }
  func.func @transform_1(%arg0: i32) -> (i32, i32) {
    %c0_i32 = arith.constant 0 : i32
    %c0_i32_0 = arith.constant 0 : i32
    %c0_i32_1 = arith.constant 0 : i32
    return %c0_i32, %c0_i32_0 : i32, i32
  }
  func.func @transform_2(%arg0: i32) -> (i32, i32) {
    %c0_i32 = arith.constant 0 : i32
    %c0_i32_0 = arith.constant 0 : i32
    %c0_i32_1 = arith.constant 0 : i32
    return %c0_i32, %c0_i32_0 : i32, i32
  }
  func.func @transform_3(%arg0: i32) -> (i32, i32) {
    %c0_i32 = arith.constant 0 : i32
    %c0_i32_0 = arith.constant 0 : i32
    %c0_i32_1 = arith.constant 0 : i32
    return %c0_i32, %c0_i32_0 : i32, i32
  }
  func.func @transform_4(%arg0: i32) -> (i32, i32) {
    %c0_i32 = arith.constant 0 : i32
    %c0_i32_0 = arith.constant 0 : i32
    %c0_i32_1 = arith.constant 0 : i32
    return %c0_i32, %c0_i32_0 : i32, i32
  }
  func.func @transform_5(%arg0: i32) -> (i32, i32) {
    %c0_i32 = arith.constant 0 : i32
    %c0_i32_0 = arith.constant 0 : i32
    %c0_i32_1 = arith.constant 0 : i32
    return %c0_i32, %c0_i32_0 : i32, i32
  }
  func.func @transform_6(%arg0: i32) -> (i32, i32) {
    %c0_i32 = arith.constant 0 : i32
    %c0_i32_0 = arith.constant 0 : i32
    %c0_i32_1 = arith.constant 0 : i32
    return %c0_i32, %c0_i32_0 : i32, i32
  }
  func.func @transform_7(%arg0: i32) -> (i32, i32) {
    %c0_i32 = arith.constant 0 : i32
    %c0_i32_0 = arith.constant 0 : i32
    return %arg0, %c0_i32 : i32, i32
  }
}

</mosaic_0001>

<llo_original>
// kernel: tpu_custom_call.1
$region0: #{tpu_custom_call.1}
  #allocation0 [shape = 'u32[]', space=smem, size = 0x4, offset = 0x4, fixed_abs, tag = 'smem constant byte address 0x4 - core index']
  #allocation1 [shape = 'u32[72,128]{1,0:T(1,128)}', space=vmem, size = 0x9000, scoped, tag = 'internal scratch']
  #allocation2 [shape = 'f32[1,1]{1,0:T(1,128)S(1)}', space=vmem, size = 0x200, scoped, tag = 'scoped memory for tpu_custom_call.1']
  %s0 = inlined_call_operand.vmem [shape: f32[256,8], index: 0, kind: input, shape index: {}]
  %s1 = inlined_call_operand.vmem [shape: bf16[8,256], index: 1, kind: input, shape index: {}]
  %s2 = inlined_call_operand.vmem [shape: f32[1,256], index: 2, kind: input, shape index: {}]
  %s3 = inlined_call_operand.vmem [shape: bf16[256,256], index: 3, kind: input, shape index: {}]
  %s4 = inlined_call_operand.vmem [shape: f32[1,256], index: 4, kind: input, shape index: {}]
  %s5 = inlined_call_operand.vmem [shape: f32[1,256], index: 5, kind: input, shape index: {}]
  %s6 = inlined_call_operand.<no memory space> [shape: f32[1,1], index: 6, kind: input, shape index: {}]
  %s7 = inlined_call_operand.vmem [shape: f32[256,1], index: 7, kind: output, shape index: {}]
  %s8 = sld [smem:[#allocation0]]
  $region61: #{tpu_custom_call.1} parent=0
    _
  %s10 = ssub.s32 1, %s8
  %s11 = scalar_select 0, %s10, %s8
  %v12 = vstv %s6
  %13 = vst [vmem:[#allocation2] sm:$0x1] %v12
  loop: start=0, step=1, limit=4
  $region2: #{tpu_custom_call.1} parent=0 // loop_pre_header
    _
  $region3: #{tpu_custom_call.1} parent=0 // loop_header
    %s15 = sphi 0, %s19
    %p16 = scmp.ge.s32.totalorder %s15, 4
    %s25 = sphi 0, %s27
    %s28 = sphi 0, %s25
    %s29 = sphi 0, %s28
    %s45 = sphi 0, %s29
    %s49 = sphi 0, %s49
    %s51 = sphi 0, %s49
    %s52 = sphi 0, %s51
    %s66 = sphi 0, %s52
    %s70 = sphi 0, %s70
    %s72 = sphi 0, %s70
    %s73 = sphi 0, %s72
    %s87 = sphi 0, %s73
    %s91 = sphi 0, %s91
    %s93 = sphi 0, %s91
    %s94 = sphi 0, %s93
    %s108 = sphi 0, %s94
    %s112 = sphi 0, %s112
    %s114 = sphi 0, %s112
    %s115 = sphi 0, %s114
    %s129 = sphi 0, %s115
    %s133 = sphi 0, %s133
    %s135 = sphi 0, %s133
    %s136 = sphi 0, %s135
    %s150 = sphi 0, %s136
    %s154 = sphi 0, %s154
    %s156 = sphi 0, %s154
    %s157 = sphi 0, %s156
    %s171 = sphi 0, %s157
    %s177 = sphi 0, %s179
    %s180 = sphi 0, %s177
    %s181 = sphi 0, %s180
    %s197 = sphi 0, %s181
  $region4: #{tpu_custom_call.1} parent=0 // loop_header_branch
    %18 = sbr.rel (%p16) target = $region8
  $region5: #{tpu_custom_call.1} parent=0 // loop_body
    %s20 = ssub.s32 %s15, 1
    %s21 = ssub.s32 %s15, 2
    %s22 = sadd.s32 %s15, 1
    %s23 = ssub.s32 %s15, %s22
    %p24 = scmp.eq.s32.totalorder %s23, 0
    %s26 = sadd.s32 %s25, 1
    %s27 = scalar_select %p24, %s25, %s26
    %p30 = pneg %p24
    %p31 = scmp.eq.s32.totalorder %s15, 1
    %p32 = por %p30, %p31
    %p33 = scmp.ne.s32.totalorder %s25, %s28
    %p34 = scmp.eq.s32.totalorder %s15, 0
    %p35 = por %p33, %p34
    %p36 = scmp.ne.s32.totalorder %s25, %s28
    %p37 = scmp.eq.s32.totalorder %s20, 1
    %p38 = por %p36, %p37
    %p39 = scmp.ne.s32.totalorder %s28, %s29
    %p40 = scmp.eq.s32.totalorder %s20, 0
    %p41 = por %p39, %p40
    %p42 = scmp.ne.s32.totalorder %s28, %s29
    %p43 = scmp.eq.s32.totalorder %s21, 1
    %p44 = por %p42, %p43
    %p46 = scmp.ne.s32.totalorder %s29, %s45
    %p47 = scmp.eq.s32.totalorder %s21, 0
    %p48 = por %p46, %p47
    %s50 = sadd.s32 %s49, 1
    %p53 = scmp.eq.s32.totalorder %s15, 1
    %p54 = scmp.ne.s32.totalorder %s49, %s51
    %p55 = scmp.eq.s32.totalorder %s15, 0
    %p56 = por %p54, %p55
    %p57 = scmp.ne.s32.totalorder %s49, %s51
    %p58 = scmp.eq.s32.totalorder %s20, 1
    %p59 = por %p57, %p58
    %p60 = scmp.ne.s32.totalorder %s51, %s52
    %p61 = scmp.eq.s32.totalorder %s20, 0
    %p62 = por %p60, %p61
    %p63 = scmp.ne.s32.totalorder %s51, %s52
    %p64 = scmp.eq.s32.totalorder %s21, 1
    %p65 = por %p63, %p64
    %p67 = scmp.ne.s32.totalorder %s52, %s66
    %p68 = scmp.eq.s32.totalorder %s21, 0
    %p69 = por %p67, %p68
    %s71 = sadd.s32 %s70, 1
    %p74 = scmp.eq.s32.totalorder %s15, 1
    %p75 = scmp.ne.s32.totalorder %s70, %s72
    %p76 = scmp.eq.s32.totalorder %s15, 0
    %p77 = por %p75, %p76
    %p78 = scmp.ne.s32.totalorder %s70, %s72
    %p79 = scmp.eq.s32.totalorder %s20, 1
    %p80 = por %p78, %p79
    %p81 = scmp.ne.s32.totalorder %s72, %s73
    %p82 = scmp.eq.s32.totalorder %s20, 0
    %p83 = por %p81, %p82
    %p84 = scmp.ne.s32.totalorder %s72, %s73
    %p85 = scmp.eq.s32.totalorder %s21, 1
    %p86 = por %p84, %p85
    %p88 = scmp.ne.s32.totalorder %s73, %s87
    %p89 = scmp.eq.s32.totalorder %s21, 0
    %p90 = por %p88, %p89
    %s92 = sadd.s32 %s91, 1
    %p95 = scmp.eq.s32.totalorder %s15, 1
    %p96 = scmp.ne.s32.totalorder %s91, %s93
    %p97 = scmp.eq.s32.totalorder %s15, 0
    %p98 = por %p96, %p97
    %p99 = scmp.ne.s32.totalorder %s91, %s93
    %p100 = scmp.eq.s32.totalorder %s20, 1
    %p101 = por %p99, %p100
    %p102 = scmp.ne.s32.totalorder %s93, %s94
    %p103 = scmp.eq.s32.totalorder %s20, 0
    %p104 = por %p102, %p103
    %p105 = scmp.ne.s32.totalorder %s93, %s94
    %p106 = scmp.eq.s32.totalorder %s21, 1
    %p107 = por %p105, %p106
    %p109 = scmp.ne.s32.totalorder %s94, %s108
    %p110 = scmp.eq.s32.totalorder %s21, 0
    %p111 = por %p109, %p110
    %s113 = sadd.s32 %s112, 1
    %p116 = scmp.eq.s32.totalorder %s15, 1
    %p117 = scmp.ne.s32.totalorder %s112, %s114
    %p118 = scmp.eq.s32.totalorder %s15, 0
    %p119 = por %p117, %p118
    %p120 = scmp.ne.s32.totalorder %s112, %s114
    %p121 = scmp.eq.s32.totalorder %s20, 1
    %p122 = por %p120, %p121
    %p123 = scmp.ne.s32.totalorder %s114, %s115
    %p124 = scmp.eq.s32.totalorder %s20, 0
    %p125 = por %p123, %p124
    %p126 = scmp.ne.s32.totalorder %s114, %s115
    %p127 = scmp.eq.s32.totalorder %s21, 1
    %p128 = por %p126, %p127
    %p130 = scmp.ne.s32.totalorder %s115, %s129
    %p131 = scmp.eq.s32.totalorder %s21, 0
    %p132 = por %p130, %p131
    %s134 = sadd.s32 %s133, 1
    %p137 = scmp.eq.s32.totalorder %s15, 1
    %p138 = scmp.ne.s32.totalorder %s133, %s135
    %p139 = scmp.eq.s32.totalorder %s15, 0
    %p140 = por %p138, %p139
    %p141 = scmp.ne.s32.totalorder %s133, %s135
    %p142 = scmp.eq.s32.totalorder %s20, 1
    %p143 = por %p141, %p142
    %p144 = scmp.ne.s32.totalorder %s135, %s136
    %p145 = scmp.eq.s32.totalorder %s20, 0
    %p146 = por %p144, %p145
    %p147 = scmp.ne.s32.totalorder %s135, %s136
    %p148 = scmp.eq.s32.totalorder %s21, 1
    %p149 = por %p147, %p148
    %p151 = scmp.ne.s32.totalorder %s136, %s150
    %p152 = scmp.eq.s32.totalorder %s21, 0
    %p153 = por %p151, %p152
    %s155 = sadd.s32 %s154, 1
    %p158 = scmp.eq.s32.totalorder %s15, 1
    %p159 = scmp.ne.s32.totalorder %s154, %s156
    %p160 = scmp.eq.s32.totalorder %s15, 0
    %p161 = por %p159, %p160
    %p162 = scmp.ne.s32.totalorder %s154, %s156
    %p163 = scmp.eq.s32.totalorder %s20, 1
    %p164 = por %p162, %p163
    %p165 = scmp.ne.s32.totalorder %s156, %s157
    %p166 = scmp.eq.s32.totalorder %s20, 0
    %p167 = por %p165, %p166
    %p168 = scmp.ne.s32.totalorder %s156, %s157
    %p169 = scmp.eq.s32.totalorder %s21, 1
    %p170 = por %p168, %p169
    %p172 = scmp.ne.s32.totalorder %s157, %s171
    %p173 = scmp.eq.s32.totalorder %s21, 0
    %p174 = por %p172, %p173
    %s175 = ssub.s32 %s15, %s22
    %p176 = scmp.eq.s32.totalorder %s175, 0
    %s178 = sadd.s32 %s177, 1
    %s179 = scalar_select %p176, %s177, %s178
    %p182 = pneg %p176
    %p183 = scmp.eq.s32.totalorder %s15, 1
    %p184 = por %p182, %p183
    %p185 = scmp.ne.s32.totalorder %s177, %s180
    %p186 = scmp.eq.s32.totalorder %s15, 0
    %p187 = por %p185, %p186
    %p188 = scmp.ne.s32.totalorder %s177, %s180
    %p189 = scmp.eq.s32.totalorder %s20, 1
    %p190 = por %p188, %p189
    %p191 = scmp.ne.s32.totalorder %s180, %s181
    %p192 = scmp.eq.s32.totalorder %s20, 0
    %p193 = por %p191, %p192
    %p194 = scmp.ne.s32.totalorder %s180, %s181
    %p195 = scmp.eq.s32.totalorder %s21, 1
    %p196 = por %p194, %p195
    %p198 = scmp.ne.s32.totalorder %s181, %s197
    %p199 = scmp.eq.s32.totalorder %s21, 0
    %p200 = por %p198, %p199
    %p201 = scmp.le.s32.totalorder 1, %s15
    %p202 = scmp.lt.s32.totalorder %s15, 3
    %p203 = pnand %p201, %p202
    %p204 = pneg %p203
    // Predicated region
    $region9: #{tpu_custom_call.1} parent=5 // pred_check
      _
    $region10: #{tpu_custom_call.1} parent=5 // pred_check_branch
      %206 = sbr.rel (%p203) target = $region12
    $region11: #{tpu_custom_call.1} parent=5 // pred_region
      %s207 = ssub.s32 %s15, 1
      // Predicated region
      $region13: #{tpu_custom_call.1} parent=11 // pred_check
        %p208 = pneg %p62
      $region14: #{tpu_custom_call.1} parent=11 // pred_check_branch
        %210 = sbr.rel (%p208) target = $region16
      $region15: #{tpu_custom_call.1} parent=11 // pred_region
        _
      $region16: #{tpu_custom_call.1} parent=11 // pred_fallthru
        _
      // Predicated region
      $region17: #{tpu_custom_call.1} parent=11 // pred_check
        %p211 = pneg %p83
      $region18: #{tpu_custom_call.1} parent=11 // pred_check_branch
        %213 = sbr.rel (%p211) target = $region20
      $region19: #{tpu_custom_call.1} parent=11 // pred_region
        _
      $region20: #{tpu_custom_call.1} parent=11 // pred_fallthru
        _
      // Predicated region
      $region21: #{tpu_custom_call.1} parent=11 // pred_check
        %p214 = pneg %p104
      $region22: #{tpu_custom_call.1} parent=11 // pred_check_branch
        %216 = sbr.rel (%p214) target = $region24
      $region23: #{tpu_custom_call.1} parent=11 // pred_region
        _
      $region24: #{tpu_custom_call.1} parent=11 // pred_fallthru
        _
      // Predicated region
      $region25: #{tpu_custom_call.1} parent=11 // pred_check
        %p217 = pneg %p125
      $region26: #{tpu_custom_call.1} parent=11 // pred_check_branch
        %219 = sbr.rel (%p217) target = $region28
      $region27: #{tpu_custom_call.1} parent=11 // pred_region
        _
      $region28: #{tpu_custom_call.1} parent=11 // pred_fallthru
        _
      // Predicated region
      $region29: #{tpu_custom_call.1} parent=11 // pred_check
        %p220 = pneg %p146
      $region30: #{tpu_custom_call.1} parent=11 // pred_check_branch
        %222 = sbr.rel (%p220) target = $region32
      $region31: #{tpu_custom_call.1} parent=11 // pred_region
        _
      $region32: #{tpu_custom_call.1} parent=11 // pred_fallthru
        _
      // Predicated region
      $region33: #{tpu_custom_call.1} parent=11 // pred_check
        %p223 = pneg %p167
      $region34: #{tpu_custom_call.1} parent=11 // pred_check_branch
        %225 = sbr.rel (%p223) target = $region36
      $region35: #{tpu_custom_call.1} parent=11 // pred_region
        _
      $region36: #{tpu_custom_call.1} parent=11 // pred_fallthru
        _
    $region12: #{tpu_custom_call.1} parent=5 // pred_fallthru
      _
    %p226 = scmp.lt.s32.totalorder %s15, 2
    // Predicated region
    $region37: #{tpu_custom_call.1} parent=5 // pred_check
      %p227 = pneg %p226
    $region38: #{tpu_custom_call.1} parent=5 // pred_check_branch
      %229 = sbr.rel (%p227) target = $region40
    $region39: #{tpu_custom_call.1} parent=5 // pred_region
      // Predicated region
      $region41: #{tpu_custom_call.1} parent=39 // pred_check
        %p230 = pneg %p35
      $region42: #{tpu_custom_call.1} parent=39 // pred_check_branch
        %232 = sbr.rel (%p230) target = $region44
      $region43: #{tpu_custom_call.1} parent=39 // pred_region
        %s233 = smul.u32 16, %s15
        %p234 = scmp.lt.s32.totalorder %s233, 31
        %s235 = scalar_select %p234, %s233, 31
        %s236 = smul.addr %s235, 8
        %s237 = scalar_lea.vmem %s0, %s236
        %s238 = smul.u32 16, %s15
      $region44: #{tpu_custom_call.1} parent=39 // pred_fallthru
        _
    $region40: #{tpu_custom_call.1} parent=5 // pred_fallthru
      _
    %p239 = scmp.le.s32.totalorder 1, %s15
    %p240 = scmp.lt.s32.totalorder %s15, 3
    %p241 = pnand %p239, %p240
    %p242 = pneg %p241
    // Predicated region
    $region45: #{tpu_custom_call.1} parent=5 // pred_check
      _
    $region46: #{tpu_custom_call.1} parent=5 // pred_check_branch
      %244 = sbr.rel (%p241) target = $region48
    $region47: #{tpu_custom_call.1} parent=5 // pred_region
      %s245 = ssub.s32 %s15, 1
      %s246 = smul.u32 16, %s20
      %p247 = scmp.lt.s32.totalorder %s246, 31
      %s248 = scalar_select %p247, %s246, 31
      %s249 = smul.addr %s248, 8
      %s250 = scalar_lea.vmem %s0, %s249
      %p251 = pneg %p41
      %p252 = pneg %p38
      %p253 = pneg %p62
      %p254 = pneg %p59
      %p255 = pneg %p83
      %p256 = pneg %p80
      %p257 = pneg %p104
      %p258 = pneg %p101
      %p259 = pneg %p125
      %p260 = pneg %p122
      %p261 = pneg %p146
      %p262 = pneg %p143
      %p263 = pneg %p167
      %p264 = pneg %p164
      %p265 = pneg %p193
      %p266 = pneg %p190
      %s267 = smul.u32 16, %s20
      %p268 = scmp.lt.s32.totalorder %s267, 31
      %s269 = scalar_select %p268, %s267, 31
      %s270 = smul.addr %s269, 8
      %s271 = scalar_lea.vmem %s7, %s270
      %s272 = smul.u32 16, %s20
      %p273 = scmp.lt.s32.totalorder %s272, 31
      %s274 = scalar_select %p273, %s272, 31
      %s275 = smul.addr %s274, 8
      %s276 = scalar_lea.vmem %s0, %s275
      %s277 = smul.u32 16, %s20
      %s278 = smul.u32 16, %s20
      %p279 = scmp.lt.s32.totalorder %s278, 31
      %s280 = scalar_select %p279, %s278, 31
      %s281 = smul.addr %s280, 8
      %s282 = scalar_lea.vmem %s7, %s281
      %s283 = smul.u32 16, %s20
      %v285 = vld [vmem:[%s276] sm:$0xff]
      %v286 = vld [vmem:[%s276 + $0x8] sm:$0xff]
      %v287 = vld [vmem:[%s276 + $0x10] sm:$0xff]
      %v288 = vld [vmem:[%s276 + $0x18] sm:$0xff]
      %v289 = vld [vmem:[%s276 + $0x20] sm:$0xff]
      %v290 = vld [vmem:[%s276 + $0x28] sm:$0xff]
      %v291 = vld [vmem:[%s276 + $0x30] sm:$0xff]
      %v292 = vld [vmem:[%s276 + $0x38] sm:$0xff]
      %v293 = vld [vmem:[%s276 + $0x40] sm:$0xff]
      %v294 = vld [vmem:[%s276 + $0x48] sm:$0xff]
      %v295 = vld [vmem:[%s276 + $0x50] sm:$0xff]
      %v296 = vld [vmem:[%s276 + $0x58] sm:$0xff]
      %v297 = vld [vmem:[%s276 + $0x60] sm:$0xff]
      %v298 = vld [vmem:[%s276 + $0x68] sm:$0xff]
      %v299 = vld [vmem:[%s276 + $0x70] sm:$0xff]
      %v300 = vld [vmem:[%s276 + $0x78] sm:$0xff]
      %v301 = vpack.c.bf16 %v286, %v285
      %v302 = vpack.c.bf16 %v288, %v287
      %v303 = vpack.c.bf16 %v290, %v289
      %v304 = vpack.c.bf16 %v292, %v291
      %v305 = vpack.c.bf16 %v294, %v293
      %v306 = vpack.c.bf16 %v296, %v295
      %v307 = vpack.c.bf16 %v298, %v297
      %v308 = vpack.c.bf16 %v300, %v299
      %v309 = vld [vmem:[%s1] sm:$0xff]
      %v310 = vld [vmem:[%s2] sm:$0x3]
      %v312 = vperm.slane %v310, 0
      %v313 = vperm.slane %v310, 1
      %v317 = vunpack.c.l.b16 %v309
      %v318 = vunpack.c.h.b16 %v309
      %v319 = vpack.c.b16 %v317, %v317
      %v320 = vpack.c.b16 %v318, %v318
      %vm321 = vcmask 64512
      %v323 = vsel %vm321, %v301, 0
      %v326 = vsel %vm321, %v302, 0
      %v329 = vsel %vm321, %v303, 0
      %v332 = vsel %vm321, %v304, 0
      %v335 = vsel %vm321, %v305, 0
      %v338 = vsel %vm321, %v306, 0
      %v341 = vsel %vm321, %v307, 0
      %v344 = vsel %vm321, %v308, 0
      %vm346 = vcmask 1043456
      %v348 = vsel %vm346, %v319, 0
      %v351 = vsel %vm346, %v320, 0
      %353 = vmatpush.bf16.msra.mxu0 0
      %354 = vmatpush.bf16.msra.mxu0 0
      %355 = vmatpush.bf16.msra.mxu0 0
      %356 = vmatpush.bf16.msra.mxu0 0
      %357 = vmatpush.bf16.msra.mxu0 0
      %358 = vmatpush.bf16.msra.mxu0 0
      %359 = vmatpush.bf16.msra.mxu0 0
      %360 = vmatpush.bf16.msra.mxu0 %v348
      %361 = vmatmul.bf16.gmra.mxu0 %v323
      %v362 = vpop.f32.mrf.mxu0
      %v363 = vadd.f32 %v312, %v362
      %v364 = vpop.f32.mrf.mxu0
      %v365 = vadd.f32 %v312, %v364
      %366 = vmatmul.bf16.gmra.mxu0 %v326
      %v367 = vpop.f32.mrf.mxu0
      %v368 = vadd.f32 %v312, %v367
      %v369 = vpop.f32.mrf.mxu0
      %v370 = vadd.f32 %v312, %v369
      %371 = vmatmul.bf16.gmra.mxu0 %v329
      %v372 = vpop.f32.mrf.mxu0
      %v373 = vadd.f32 %v312, %v372
      %v374 = vpop.f32.mrf.mxu0
      %v375 = vadd.f32 %v312, %v374
      %376 = vmatmul.bf16.gmra.mxu0 %v332
      %v377 = vpop.f32.mrf.mxu0
      %v378 = vadd.f32 %v312, %v377
      %v379 = vpop.f32.mrf.mxu0
      %v380 = vadd.f32 %v312, %v379
      %381 = vmatmul.bf16.gmra.mxu0 %v335
      %v382 = vpop.f32.mrf.mxu0
      %v383 = vadd.f32 %v312, %v382
      %v384 = vpop.f32.mrf.mxu0
      %v385 = vadd.f32 %v312, %v384
      %386 = vmatmul.bf16.gmra.mxu0 %v338
      %v387 = vpop.f32.mrf.mxu0
      %v388 = vadd.f32 %v312, %v387
      %v389 = vpop.f32.mrf.mxu0
      %v390 = vadd.f32 %v312, %v389
      %391 = vmatmul.bf16.gmra.mxu0 %v341
      %v392 = vpop.f32.mrf.mxu0
      %v393 = vadd.f32 %v312, %v392
      %v394 = vpop.f32.mrf.mxu0
      %v395 = vadd.f32 %v312, %v394
      %396 = vmatmul.bf16.gmra.mxu0 %v344
      %v397 = vpop.f32.mrf.mxu0
      %v398 = vadd.f32 %v312, %v397
      %v399 = vpop.f32.mrf.mxu0
      %v400 = vadd.f32 %v312, %v399
      %401 = vdwg.mxu0
      %402 = vmatpush.bf16.msra.mxu0 0
      %403 = vmatpush.bf16.msra.mxu0 0
      %404 = vmatpush.bf16.msra.mxu0 0
      %405 = vmatpush.bf16.msra.mxu0 0
      %406 = vmatpush.bf16.msra.mxu0 0
      %407 = vmatpush.bf16.msra.mxu0 0
      %408 = vmatpush.bf16.msra.mxu0 0
      %409 = vmatpush.bf16.msra.mxu0 %v351
      %410 = vmatmul.bf16.gmra.mxu0 %v323
      %v411 = vpop.f32.mrf.mxu0
      %v412 = vadd.f32 %v313, %v411
      %v413 = vpop.f32.mrf.mxu0
      %v414 = vadd.f32 %v313, %v413
      %415 = vmatmul.bf16.gmra.mxu0 %v326
      %v416 = vpop.f32.mrf.mxu0
      %v417 = vadd.f32 %v313, %v416
      %v418 = vpop.f32.mrf.mxu0
      %v419 = vadd.f32 %v313, %v418
      %420 = vmatmul.bf16.gmra.mxu0 %v329
      %v421 = vpop.f32.mrf.mxu0
      %v422 = vadd.f32 %v313, %v421
      %v423 = vpop.f32.mrf.mxu0
      %v424 = vadd.f32 %v313, %v423
      %425 = vmatmul.bf16.gmra.mxu0 %v332
      %v426 = vpop.f32.mrf.mxu0
      %v427 = vadd.f32 %v313, %v426
      %v428 = vpop.f32.mrf.mxu0
      %v429 = vadd.f32 %v313, %v428
      %430 = vmatmul.bf16.gmra.mxu0 %v335
      %v431 = vpop.f32.mrf.mxu0
      %v432 = vadd.f32 %v313, %v431
      %v433 = vpop.f32.mrf.mxu0
      %v434 = vadd.f32 %v313, %v433
      %435 = vmatmul.bf16.gmra.mxu0 %v338
      %v436 = vpop.f32.mrf.mxu0
      %v437 = vadd.f32 %v313, %v436
      %v438 = vpop.f32.mrf.mxu0
      %v439 = vadd.f32 %v313, %v438
      %440 = vmatmul.bf16.gmra.mxu0 %v341
      %v441 = vpop.f32.mrf.mxu0
      %v442 = vadd.f32 %v313, %v441
      %v443 = vpop.f32.mrf.mxu0
      %v444 = vadd.f32 %v313, %v443
      %445 = vmatmul.bf16.gmra.mxu0 %v344
      %v446 = vpop.f32.mrf.mxu0
      %v447 = vadd.f32 %v313, %v446
      %v448 = vpop.f32.mrf.mxu0
      %v449 = vadd.f32 %v313, %v448
      %450 = vdwg.mxu0
      %v451 = vmax.f32 %v363, 0.0
      %v452 = vmax.f32 %v412, 0.0
      %v453 = vmax.f32 %v365, 0.0
      %v454 = vmax.f32 %v414, 0.0
      %v455 = vmax.f32 %v368, 0.0
      %v456 = vmax.f32 %v417, 0.0
      %v457 = vmax.f32 %v370, 0.0
      %v458 = vmax.f32 %v419, 0.0
      %v459 = vmax.f32 %v373, 0.0
      %v460 = vmax.f32 %v422, 0.0
      %v461 = vmax.f32 %v375, 0.0
      %v462 = vmax.f32 %v424, 0.0
      %v463 = vmax.f32 %v378, 0.0
      %v464 = vmax.f32 %v427, 0.0
      %v465 = vmax.f32 %v380, 0.0
      %v466 = vmax.f32 %v429, 0.0
      %v467 = vmax.f32 %v383, 0.0
      %v468 = vmax.f32 %v432, 0.0
      %v469 = vmax.f32 %v385, 0.0
      %v470 = vmax.f32 %v434, 0.0
      %v471 = vmax.f32 %v388, 0.0
      %v472 = vmax.f32 %v437, 0.0
      %v473 = vmax.f32 %v390, 0.0
      %v474 = vmax.f32 %v439, 0.0
      %v475 = vmax.f32 %v393, 0.0
      %v476 = vmax.f32 %v442, 0.0
      %v477 = vmax.f32 %v395, 0.0
      %v478 = vmax.f32 %v444, 0.0
      %v479 = vmax.f32 %v398, 0.0
      %v480 = vmax.f32 %v447, 0.0
      %v481 = vmax.f32 %v400, 0.0
      %v482 = vmax.f32 %v449, 0.0
      %v483 = vpack.c.bf16 %v453, %v451
      %v484 = vpack.c.bf16 %v454, %v452
      %v485 = vpack.c.bf16 %v457, %v455
      %v486 = vpack.c.bf16 %v458, %v456
      %v487 = vpack.c.bf16 %v461, %v459
      %v488 = vpack.c.bf16 %v462, %v460
      %v489 = vpack.c.bf16 %v465, %v463
      %v490 = vpack.c.bf16 %v466, %v464
      %v491 = vpack.c.bf16 %v469, %v467
      %v492 = vpack.c.bf16 %v470, %v468
      %v493 = vpack.c.bf16 %v473, %v471
      %v494 = vpack.c.bf16 %v474, %v472
      %v495 = vpack.c.bf16 %v477, %v475
      %v496 = vpack.c.bf16 %v478, %v476
      %v497 = vpack.c.bf16 %v481, %v479
      %v498 = vpack.c.bf16 %v482, %v480
      %v499 = vld [vmem:[%s3] sm:$0xff]
      %v500 = vld [vmem:[%s3 + $0x8] sm:$0xff]
      %v501 = vld [vmem:[%s3 + $0x10] sm:$0xff]
      %v502 = vld [vmem:[%s3 + $0x18] sm:$0xff]
      %v503 = vld [vmem:[%s3 + $0x20] sm:$0xff]
      %v504 = vld [vmem:[%s3 + $0x28] sm:$0xff]
      %v505 = vld [vmem:[%s3 + $0x30] sm:$0xff]
      %v506 = vld [vmem:[%s3 + $0x38] sm:$0xff]
      %v507 = vld [vmem:[%s3 + $0x40] sm:$0xff]
      %v508 = vld [vmem:[%s3 + $0x48] sm:$0xff]
      %v509 = vld [vmem:[%s3 + $0x50] sm:$0xff]
      %v510 = vld [vmem:[%s3 + $0x58] sm:$0xff]
      %v511 = vld [vmem:[%s3 + $0x60] sm:$0xff]
      %v512 = vld [vmem:[%s3 + $0x68] sm:$0xff]
      %v513 = vld [vmem:[%s3 + $0x70] sm:$0xff]
      %v514 = vld [vmem:[%s3 + $0x78] sm:$0xff]
      %v515 = vld [vmem:[%s3 + $0x80] sm:$0xff]
      %v516 = vld [vmem:[%s3 + $0x88] sm:$0xff]
      %v517 = vld [vmem:[%s3 + $0x90] sm:$0xff]
      %v518 = vld [vmem:[%s3 + $0x98] sm:$0xff]
      %v519 = vld [vmem:[%s3 + $0xa0] sm:$0xff]
      %v520 = vld [vmem:[%s3 + $0xa8] sm:$0xff]
      %v521 = vld [vmem:[%s3 + $0xb0] sm:$0xff]
      %v522 = vld [vmem:[%s3 + $0xb8] sm:$0xff]
      %v523 = vld [vmem:[%s3 + $0xc0] sm:$0xff]
      %v524 = vld [vmem:[%s3 + $0xc8] sm:$0xff]
      %v525 = vld [vmem:[%s3 + $0xd0] sm:$0xff]
      %v526 = vld [vmem:[%s3 + $0xd8] sm:$0xff]
      %v527 = vld [vmem:[%s3 + $0xe0] sm:$0xff]
      %v528 = vld [vmem:[%s3 + $0xe8] sm:$0xff]
      %v529 = vld [vmem:[%s3 + $0xf0] sm:$0xff]
      %v530 = vld [vmem:[%s3 + $0xf8] sm:$0xff]
      %v531 = vld [vmem:[%s4] sm:$0x3]
      %v533 = vperm.slane %v531, 0
      %v534 = vperm.slane %v531, 1
      %v569 = vunpack.c.l.b16 %v499
      %v570 = vunpack.c.h.b16 %v499
      %v571 = vunpack.c.l.b16 %v500
      %v572 = vunpack.c.h.b16 %v500
      %v573 = vunpack.c.l.b16 %v501
      %v574 = vunpack.c.h.b16 %v501
      %v575 = vunpack.c.l.b16 %v502
      %v576 = vunpack.c.h.b16 %v502
      %v577 = vunpack.c.l.b16 %v503
      %v578 = vunpack.c.h.b16 %v503
      %v579 = vunpack.c.l.b16 %v504
      %v580 = vunpack.c.h.b16 %v504
      %v581 = vunpack.c.l.b16 %v505
      %v582 = vunpack.c.h.b16 %v505
      %v583 = vunpack.c.l.b16 %v506
      %v584 = vunpack.c.h.b16 %v506
      %v585 = vunpack.c.l.b16 %v507
      %v586 = vunpack.c.h.b16 %v507
      %v587 = vunpack.c.l.b16 %v508
      %v588 = vunpack.c.h.b16 %v508
      %v589 = vunpack.c.l.b16 %v509
      %v590 = vunpack.c.h.b16 %v509
      %v591 = vunpack.c.l.b16 %v510
      %v592 = vunpack.c.h.b16 %v510
      %v593 = vunpack.c.l.b16 %v511
      %v594 = vunpack.c.h.b16 %v511
      %v595 = vunpack.c.l.b16 %v512
      %v596 = vunpack.c.h.b16 %v512
      %v597 = vunpack.c.l.b16 %v513
      %v598 = vunpack.c.h.b16 %v513
      %v599 = vunpack.c.l.b16 %v514
      %v600 = vunpack.c.h.b16 %v514
      %v601 = vunpack.c.l.b16 %v515
      %v602 = vunpack.c.h.b16 %v515
      %v603 = vunpack.c.l.b16 %v516
      %v604 = vunpack.c.h.b16 %v516
      %v605 = vunpack.c.l.b16 %v517
      %v606 = vunpack.c.h.b16 %v517
      %v607 = vunpack.c.l.b16 %v518
      %v608 = vunpack.c.h.b16 %v518
      %v609 = vunpack.c.l.b16 %v519
      %v610 = vunpack.c.h.b16 %v519
      %v611 = vunpack.c.l.b16 %v520
      %v612 = vunpack.c.h.b16 %v520
      %v613 = vunpack.c.l.b16 %v521
      %v614 = vunpack.c.h.b16 %v521
      %v615 = vunpack.c.l.b16 %v522
      %v616 = vunpack.c.h.b16 %v522
      %v617 = vunpack.c.l.b16 %v523
      %v618 = vunpack.c.h.b16 %v523
      %v619 = vunpack.c.l.b16 %v524
      %v620 = vunpack.c.h.b16 %v524
      %v621 = vunpack.c.l.b16 %v525
      %v622 = vunpack.c.h.b16 %v525
      %v623 = vunpack.c.l.b16 %v526
      %v624 = vunpack.c.h.b16 %v526
      %v625 = vunpack.c.l.b16 %v527
      %v626 = vunpack.c.h.b16 %v527
      %v627 = vunpack.c.l.b16 %v528
      %v628 = vunpack.c.h.b16 %v528
      %v629 = vunpack.c.l.b16 %v529
      %v630 = vunpack.c.h.b16 %v529
      %v631 = vunpack.c.l.b16 %v530
      %v632 = vunpack.c.h.b16 %v530
      %v633 = vpack.c.b16 %v571, %v569
      %v634 = vpack.c.b16 %v572, %v570
      %v635 = vpack.c.b16 %v575, %v573
      %v636 = vpack.c.b16 %v576, %v574
      %v637 = vpack.c.b16 %v579, %v577
      %v638 = vpack.c.b16 %v580, %v578
      %v639 = vpack.c.b16 %v583, %v581
      %v640 = vpack.c.b16 %v584, %v582
      %v641 = vpack.c.b16 %v587, %v585
      %v642 = vpack.c.b16 %v588, %v586
      %v643 = vpack.c.b16 %v591, %v589
      %v644 = vpack.c.b16 %v592, %v590
      %v645 = vpack.c.b16 %v595, %v593
      %v646 = vpack.c.b16 %v596, %v594
      %v647 = vpack.c.b16 %v599, %v597
      %v648 = vpack.c.b16 %v600, %v598
      %v649 = vpack.c.b16 %v603, %v601
      %v650 = vpack.c.b16 %v604, %v602
      %v651 = vpack.c.b16 %v607, %v605
      %v652 = vpack.c.b16 %v608, %v606
      %v653 = vpack.c.b16 %v611, %v609
      %v654 = vpack.c.b16 %v612, %v610
      %v655 = vpack.c.b16 %v615, %v613
      %v656 = vpack.c.b16 %v616, %v614
      %v657 = vpack.c.b16 %v619, %v617
      %v658 = vpack.c.b16 %v620, %v618
      %v659 = vpack.c.b16 %v623, %v621
      %v660 = vpack.c.b16 %v624, %v622
      %v661 = vpack.c.b16 %v627, %v625
      %v662 = vpack.c.b16 %v628, %v626
      %v663 = vpack.c.b16 %v631, %v629
      %v664 = vpack.c.b16 %v632, %v630
      %697 = vmatpush.bf16.msra.mxu0 %v647
      %698 = vmatpush.bf16.msra.mxu0 %v645
      %699 = vmatpush.bf16.msra.mxu0 %v643
      %700 = vmatpush.bf16.msra.mxu0 %v641
      %701 = vmatpush.bf16.msra.mxu0 %v639
      %702 = vmatpush.bf16.msra.mxu0 %v637
      %703 = vmatpush.bf16.msra.mxu0 %v635
      %704 = vmatpush.bf16.msra.mxu0 %v633
      %705 = vmatmul.bf16.gmra.mxu0 %v483
      %v706 = vpop.f32.mrf.mxu0
      %v707 = vadd.f32 %v533, %v706
      %v708 = vpop.f32.mrf.mxu0
      %v709 = vadd.f32 %v533, %v708
      %710 = vmatmul.bf16.gmra.mxu0 %v485
      %v711 = vpop.f32.mrf.mxu0
      %v712 = vadd.f32 %v533, %v711
      %v713 = vpop.f32.mrf.mxu0
      %v714 = vadd.f32 %v533, %v713
      %715 = vmatmul.bf16.gmra.mxu0 %v487
      %v716 = vpop.f32.mrf.mxu0
      %v717 = vadd.f32 %v533, %v716
      %v718 = vpop.f32.mrf.mxu0
      %v719 = vadd.f32 %v533, %v718
      %720 = vmatmul.bf16.gmra.mxu0 %v489
      %v721 = vpop.f32.mrf.mxu0
      %v722 = vadd.f32 %v533, %v721
      %v723 = vpop.f32.mrf.mxu0
      %v724 = vadd.f32 %v533, %v723
      %725 = vmatmul.bf16.gmra.mxu0 %v491
      %v726 = vpop.f32.mrf.mxu0
      %v727 = vadd.f32 %v533, %v726
      %v728 = vpop.f32.mrf.mxu0
      %v729 = vadd.f32 %v533, %v728
      %730 = vmatmul.bf16.gmra.mxu0 %v493
      %v731 = vpop.f32.mrf.mxu0
      %v732 = vadd.f32 %v533, %v731
      %v733 = vpop.f32.mrf.mxu0
      %v734 = vadd.f32 %v533, %v733
      %735 = vmatmul.bf16.gmra.mxu0 %v495
      %v736 = vpop.f32.mrf.mxu0
      %v737 = vadd.f32 %v533, %v736
      %v738 = vpop.f32.mrf.mxu0
      %v739 = vadd.f32 %v533, %v738
      %740 = vmatmul.bf16.gmra.mxu0 %v497
      %v741 = vpop.f32.mrf.mxu0
      %v742 = vadd.f32 %v533, %v741
      %v743 = vpop.f32.mrf.mxu0
      %v744 = vadd.f32 %v533, %v743
      %745 = vdwg.mxu0
      %746 = vmatpush.bf16.msra.mxu0 %v663
      %747 = vmatpush.bf16.msra.mxu0 %v661
      %748 = vmatpush.bf16.msra.mxu0 %v659
      %749 = vmatpush.bf16.msra.mxu0 %v657
      %750 = vmatpush.bf16.msra.mxu0 %v655
      %751 = vmatpush.bf16.msra.mxu0 %v653
      %752 = vmatpush.bf16.msra.mxu0 %v651
      %753 = vmatpush.bf16.msra.mxu0 %v649
      %754 = vmatmul.bf16.gmra.mxu0 %v484
      %v755 = vpop.f32.mrf.mxu0
      %v756 = vadd.f32 %v707, %v755
      %v757 = vpop.f32.mrf.mxu0
      %v758 = vadd.f32 %v709, %v757
      %759 = vmatmul.bf16.gmra.mxu0 %v486
      %v760 = vpop.f32.mrf.mxu0
      %v761 = vadd.f32 %v712, %v760
      %v762 = vpop.f32.mrf.mxu0
      %v763 = vadd.f32 %v714, %v762
      %764 = vmatmul.bf16.gmra.mxu0 %v488
      %v765 = vpop.f32.mrf.mxu0
      %v766 = vadd.f32 %v717, %v765
      %v767 = vpop.f32.mrf.mxu0
      %v768 = vadd.f32 %v719, %v767
      %769 = vmatmul.bf16.gmra.mxu0 %v490
      %v770 = vpop.f32.mrf.mxu0
      %v771 = vadd.f32 %v722, %v770
      %v772 = vpop.f32.mrf.mxu0
      %v773 = vadd.f32 %v724, %v772
      %774 = vmatmul.bf16.gmra.mxu0 %v492
      %v775 = vpop.f32.mrf.mxu0
      %v776 = vadd.f32 %v727, %v775
      %v777 = vpop.f32.mrf.mxu0
      %v778 = vadd.f32 %v729, %v777
      %779 = vmatmul.bf16.gmra.mxu0 %v494
      %v780 = vpop.f32.mrf.mxu0
      %v781 = vadd.f32 %v732, %v780
      %v782 = vpop.f32.mrf.mxu0
      %v783 = vadd.f32 %v734, %v782
      %784 = vmatmul.bf16.gmra.mxu0 %v496
      %v785 = vpop.f32.mrf.mxu0
      %v786 = vadd.f32 %v737, %v785
      %v787 = vpop.f32.mrf.mxu0
      %v788 = vadd.f32 %v739, %v787
      %789 = vmatmul.bf16.gmra.mxu0 %v498
      %v790 = vpop.f32.mrf.mxu0
      %v791 = vadd.f32 %v742, %v790
      %v792 = vpop.f32.mrf.mxu0
      %v793 = vadd.f32 %v744, %v792
      %794 = vdwg.mxu0
      %795 = vmatpush.bf16.msra.mxu0 %v648
      %796 = vmatpush.bf16.msra.mxu0 %v646
      %797 = vmatpush.bf16.msra.mxu0 %v644
      %798 = vmatpush.bf16.msra.mxu0 %v642
      %799 = vmatpush.bf16.msra.mxu0 %v640
      %800 = vmatpush.bf16.msra.mxu0 %v638
      %801 = vmatpush.bf16.msra.mxu0 %v636
      %802 = vmatpush.bf16.msra.mxu0 %v634
      %803 = vmatmul.bf16.gmra.mxu0 %v483
      %v804 = vpop.f32.mrf.mxu0
      %v805 = vadd.f32 %v534, %v804
      %v806 = vpop.f32.mrf.mxu0
      %v807 = vadd.f32 %v534, %v806
      %808 = vmatmul.bf16.gmra.mxu0 %v485
      %v809 = vpop.f32.mrf.mxu0
      %v810 = vadd.f32 %v534, %v809
      %v811 = vpop.f32.mrf.mxu0
      %v812 = vadd.f32 %v534, %v811
      %813 = vmatmul.bf16.gmra.mxu0 %v487
      %v814 = vpop.f32.mrf.mxu0
      %v815 = vadd.f32 %v534, %v814
      %v816 = vpop.f32.mrf.mxu0
      %v817 = vadd.f32 %v534, %v816
      %818 = vmatmul.bf16.gmra.mxu0 %v489
      %v819 = vpop.f32.mrf.mxu0
      %v820 = vadd.f32 %v534, %v819
      %v821 = vpop.f32.mrf.mxu0
      %v822 = vadd.f32 %v534, %v821
      %823 = vmatmul.bf16.gmra.mxu0 %v491
      %v824 = vpop.f32.mrf.mxu0
      %v825 = vadd.f32 %v534, %v824
      %v826 = vpop.f32.mrf.mxu0
      %v827 = vadd.f32 %v534, %v826
      %828 = vmatmul.bf16.gmra.mxu0 %v493
      %v829 = vpop.f32.mrf.mxu0
      %v830 = vadd.f32 %v534, %v829
      %v831 = vpop.f32.mrf.mxu0
      %v832 = vadd.f32 %v534, %v831
      %833 = vmatmul.bf16.gmra.mxu0 %v495
      %v834 = vpop.f32.mrf.mxu0
      %v835 = vadd.f32 %v534, %v834
      %v836 = vpop.f32.mrf.mxu0
      %v837 = vadd.f32 %v534, %v836
      %838 = vmatmul.bf16.gmra.mxu0 %v497
      %v839 = vpop.f32.mrf.mxu0
      %v840 = vadd.f32 %v534, %v839
      %v841 = vpop.f32.mrf.mxu0
      %v842 = vadd.f32 %v534, %v841
      %843 = vdwg.mxu0
      %844 = vmatpush.bf16.msra.mxu0 %v664
      %845 = vmatpush.bf16.msra.mxu0 %v662
      %846 = vmatpush.bf16.msra.mxu0 %v660
      %847 = vmatpush.bf16.msra.mxu0 %v658
      %848 = vmatpush.bf16.msra.mxu0 %v656
      %849 = vmatpush.bf16.msra.mxu0 %v654
      %850 = vmatpush.bf16.msra.mxu0 %v652
      %851 = vmatpush.bf16.msra.mxu0 %v650
      %852 = vmatmul.bf16.gmra.mxu0 %v484
      %v853 = vpop.f32.mrf.mxu0
      %v854 = vadd.f32 %v805, %v853
      %v855 = vpop.f32.mrf.mxu0
      %v856 = vadd.f32 %v807, %v855
      %857 = vmatmul.bf16.gmra.mxu0 %v486
      %v858 = vpop.f32.mrf.mxu0
      %v859 = vadd.f32 %v810, %v858
      %v860 = vpop.f32.mrf.mxu0
      %v861 = vadd.f32 %v812, %v860
      %862 = vmatmul.bf16.gmra.mxu0 %v488
      %v863 = vpop.f32.mrf.mxu0
      %v864 = vadd.f32 %v815, %v863
      %v865 = vpop.f32.mrf.mxu0
      %v866 = vadd.f32 %v817, %v865
      %867 = vmatmul.bf16.gmra.mxu0 %v490
      %v868 = vpop.f32.mrf.mxu0
      %v869 = vadd.f32 %v820, %v868
      %v870 = vpop.f32.mrf.mxu0
      %v871 = vadd.f32 %v822, %v870
      %872 = vmatmul.bf16.gmra.mxu0 %v492
      %v873 = vpop.f32.mrf.mxu0
      %v874 = vadd.f32 %v825, %v873
      %v875 = vpop.f32.mrf.mxu0
      %v876 = vadd.f32 %v827, %v875
      %877 = vmatmul.bf16.gmra.mxu0 %v494
      %v878 = vpop.f32.mrf.mxu0
      %v879 = vadd.f32 %v830, %v878
      %v880 = vpop.f32.mrf.mxu0
      %v881 = vadd.f32 %v832, %v880
      %882 = vmatmul.bf16.gmra.mxu0 %v496
      %v883 = vpop.f32.mrf.mxu0
      %v884 = vadd.f32 %v835, %v883
      %v885 = vpop.f32.mrf.mxu0
      %v886 = vadd.f32 %v837, %v885
      %887 = vmatmul.bf16.gmra.mxu0 %v498
      %v888 = vpop.f32.mrf.mxu0
      %v889 = vadd.f32 %v840, %v888
      %v890 = vpop.f32.mrf.mxu0
      %v891 = vadd.f32 %v842, %v890
      %892 = vdwg.mxu0
      %v893 = vmax.f32 %v756, 0.0
      %v894 = vmax.f32 %v854, 0.0
      %v895 = vmax.f32 %v758, 0.0
      %v896 = vmax.f32 %v856, 0.0
      %v897 = vmax.f32 %v761, 0.0
      %v898 = vmax.f32 %v859, 0.0
      %v899 = vmax.f32 %v763, 0.0
      %v900 = vmax.f32 %v861, 0.0
      %v901 = vmax.f32 %v766, 0.0
      %v902 = vmax.f32 %v864, 0.0
      %v903 = vmax.f32 %v768, 0.0
      %v904 = vmax.f32 %v866, 0.0
      %v905 = vmax.f32 %v771, 0.0
      %v906 = vmax.f32 %v869, 0.0
      %v907 = vmax.f32 %v773, 0.0
      %v908 = vmax.f32 %v871, 0.0
      %v909 = vmax.f32 %v776, 0.0
      %v910 = vmax.f32 %v874, 0.0
      %v911 = vmax.f32 %v778, 0.0
      %v912 = vmax.f32 %v876, 0.0
      %v913 = vmax.f32 %v781, 0.0
      %v914 = vmax.f32 %v879, 0.0
      %v915 = vmax.f32 %v783, 0.0
      %v916 = vmax.f32 %v881, 0.0
      %v917 = vmax.f32 %v786, 0.0
      %v918 = vmax.f32 %v884, 0.0
      %v919 = vmax.f32 %v788, 0.0
      %v920 = vmax.f32 %v886, 0.0
      %v921 = vmax.f32 %v791, 0.0
      %v922 = vmax.f32 %v889, 0.0
      %v923 = vmax.f32 %v793, 0.0
      %v924 = vmax.f32 %v891, 0.0
      %v925 = vld [vmem:[%s5] sm:$0x3]
      %v927 = vperm.slane %v925, 0
      %v928 = vperm.slane %v925, 1
      %v931 = vmul.f32 %v893, %v927
      %v932 = vmul.f32 %v894, %v928
      %v933 = vmul.f32 %v895, %v927
      %v934 = vmul.f32 %v896, %v928
      %v935 = vmul.f32 %v897, %v927
      %v936 = vmul.f32 %v898, %v928
      %v937 = vmul.f32 %v899, %v927
      %v938 = vmul.f32 %v900, %v928
      %v939 = vmul.f32 %v901, %v927
      %v940 = vmul.f32 %v902, %v928
      %v941 = vmul.f32 %v903, %v927
      %v942 = vmul.f32 %v904, %v928
      %v943 = vmul.f32 %v905, %v927
      %v944 = vmul.f32 %v906, %v928
      %v945 = vmul.f32 %v907, %v927
      %v946 = vmul.f32 %v908, %v928
      %v947 = vmul.f32 %v909, %v927
      %v948 = vmul.f32 %v910, %v928
      %v949 = vmul.f32 %v911, %v927
      %v950 = vmul.f32 %v912, %v928
      %v951 = vmul.f32 %v913, %v927
      %v952 = vmul.f32 %v914, %v928
      %v953 = vmul.f32 %v915, %v927
      %v954 = vmul.f32 %v916, %v928
      %v955 = vmul.f32 %v917, %v927
      %v956 = vmul.f32 %v918, %v928
      %v957 = vmul.f32 %v919, %v927
      %v958 = vmul.f32 %v920, %v928
      %v959 = vmul.f32 %v921, %v927
      %v960 = vmul.f32 %v922, %v928
      %v961 = vmul.f32 %v923, %v927
      %v962 = vmul.f32 %v924, %v928
      %v963 = vadd.f32 %v931, %v932
      %964 = vadd.xlane.f32.xlu0 %v963
      %v965 = vpop.xlane.xlu0 %964
      %v966 = vadd.f32 %v933, %v934
      %967 = vadd.xlane.f32.xlu0 %v966
      %v968 = vpop.xlane.xlu0 %967
      %v969 = vadd.f32 %v935, %v936
      %970 = vadd.xlane.f32.xlu0 %v969
      %v971 = vpop.xlane.xlu0 %970
      %v972 = vadd.f32 %v937, %v938
      %973 = vadd.xlane.f32.xlu0 %v972
      %v974 = vpop.xlane.xlu0 %973
      %v975 = vadd.f32 %v939, %v940
      %976 = vadd.xlane.f32.xlu0 %v975
      %v977 = vpop.xlane.xlu0 %976
      %v978 = vadd.f32 %v941, %v942
      %979 = vadd.xlane.f32.xlu0 %v978
      %v980 = vpop.xlane.xlu0 %979
      %v981 = vadd.f32 %v943, %v944
      %982 = vadd.xlane.f32.xlu0 %v981
      %v983 = vpop.xlane.xlu0 %982
      %v984 = vadd.f32 %v945, %v946
      %985 = vadd.xlane.f32.xlu0 %v984
      %v986 = vpop.xlane.xlu0 %985
      %v987 = vadd.f32 %v947, %v948
      %988 = vadd.xlane.f32.xlu0 %v987
      %v989 = vpop.xlane.xlu0 %988
      %v990 = vadd.f32 %v949, %v950
      %991 = vadd.xlane.f32.xlu0 %v990
      %v992 = vpop.xlane.xlu0 %991
      %v993 = vadd.f32 %v951, %v952
      %994 = vadd.xlane.f32.xlu0 %v993
      %v995 = vpop.xlane.xlu0 %994
      %v996 = vadd.f32 %v953, %v954
      %997 = vadd.xlane.f32.xlu0 %v996
      %v998 = vpop.xlane.xlu0 %997
      %v999 = vadd.f32 %v955, %v956
      %1000 = vadd.xlane.f32.xlu0 %v999
      %v1001 = vpop.xlane.xlu0 %1000
      %v1002 = vadd.f32 %v957, %v958
      %1003 = vadd.xlane.f32.xlu0 %v1002
      %v1004 = vpop.xlane.xlu0 %1003
      %v1005 = vadd.f32 %v959, %v960
      %1006 = vadd.xlane.f32.xlu0 %v1005
      %v1007 = vpop.xlane.xlu0 %1006
      %v1008 = vadd.f32 %v961, %v962
      %1009 = vadd.xlane.f32.xlu0 %v1008
      %v1010 = vpop.xlane.xlu0 %1009
      %v1011 = vld [vmem:[#allocation2] sm:$0x1]
      %v1013 = vperm.slane %v1011, 0
      %v1015 = vadd.f32 %v965, %v1013
      %v1016 = vadd.f32 %v968, %v1013
      %v1017 = vadd.f32 %v971, %v1013
      %v1018 = vadd.f32 %v974, %v1013
      %v1019 = vadd.f32 %v977, %v1013
      %v1020 = vadd.f32 %v980, %v1013
      %v1021 = vadd.f32 %v983, %v1013
      %v1022 = vadd.f32 %v986, %v1013
      %v1023 = vadd.f32 %v989, %v1013
      %v1024 = vadd.f32 %v992, %v1013
      %v1025 = vadd.f32 %v995, %v1013
      %v1026 = vadd.f32 %v998, %v1013
      %v1027 = vadd.f32 %v1001, %v1013
      %v1028 = vadd.f32 %v1004, %v1013
      %v1029 = vadd.f32 %v1007, %v1013
      %v1030 = vadd.f32 %v1010, %v1013
      %vm1031 = vcmask 7168
      %1032 = vst.msk [vmem:[%s282] sm:$0xff] %vm1031, %v1015
      %1033 = vst.msk [vmem:[%s282 + $0x8] sm:$0xff] %vm1031, %v1016
      %1034 = vst.msk [vmem:[%s282 + $0x10] sm:$0xff] %vm1031, %v1017
      %1035 = vst.msk [vmem:[%s282 + $0x18] sm:$0xff] %vm1031, %v1018
      %1036 = vst.msk [vmem:[%s282 + $0x20] sm:$0xff] %vm1031, %v1019
      %1037 = vst.msk [vmem:[%s282 + $0x28] sm:$0xff] %vm1031, %v1020
      %1038 = vst.msk [vmem:[%s282 + $0x30] sm:$0xff] %vm1031, %v1021
      %1039 = vst.msk [vmem:[%s282 + $0x38] sm:$0xff] %vm1031, %v1022
      %1040 = vst.msk [vmem:[%s282 + $0x40] sm:$0xff] %vm1031, %v1023
      %1041 = vst.msk [vmem:[%s282 + $0x48] sm:$0xff] %vm1031, %v1024
      %1042 = vst.msk [vmem:[%s282 + $0x50] sm:$0xff] %vm1031, %v1025
      %1043 = vst.msk [vmem:[%s282 + $0x58] sm:$0xff] %vm1031, %v1026
      %1044 = vst.msk [vmem:[%s282 + $0x60] sm:$0xff] %vm1031, %v1027
      %1045 = vst.msk [vmem:[%s282 + $0x68] sm:$0xff] %vm1031, %v1028
      %1046 = vst.msk [vmem:[%s282 + $0x70] sm:$0xff] %vm1031, %v1029
      %1047 = vst.msk [vmem:[%s282 + $0x78] sm:$0xff] %vm1031, %v1030
      %s1048 = smul.u32 16, %s20
      %p1049 = scmp.lt.s32.totalorder %s1048, 31
      %s1050 = scalar_select %p1049, %s1048, 31
      %s1051 = smul.addr %s1050, 8
      %s1052 = scalar_lea.vmem %s7, %s1051
      // Predicated region
      $region49: #{tpu_custom_call.1} parent=47 // pred_check
        %p1053 = pneg %p190
      $region50: #{tpu_custom_call.1} parent=47 // pred_check_branch
        %1055 = sbr.rel (%p1053) target = $region52
      $region51: #{tpu_custom_call.1} parent=47 // pred_region
        %s1056 = smul.u32 16, %s20
      $region52: #{tpu_custom_call.1} parent=47 // pred_fallthru
        _
    $region48: #{tpu_custom_call.1} parent=5 // pred_fallthru
      _
    %p1057 = scmp.le.s32.totalorder 2, %s15
    // Predicated region
    $region53: #{tpu_custom_call.1} parent=5 // pred_check
      %p1058 = pneg %p1057
    $region54: #{tpu_custom_call.1} parent=5 // pred_check_branch
      %1060 = sbr.rel (%p1058) target = $region56
    $region55: #{tpu_custom_call.1} parent=5 // pred_region
      %s1061 = ssub.s32 %s15, 2
      // Predicated region
      $region57: #{tpu_custom_call.1} parent=55 // pred_check
        %p1062 = pneg %p196
      $region58: #{tpu_custom_call.1} parent=55 // pred_check_branch
        %1064 = sbr.rel (%p1062) target = $region60
      $region59: #{tpu_custom_call.1} parent=55 // pred_region
        %s1065 = smul.u32 16, %s21
        %p1066 = scmp.lt.s32.totalorder %s1065, 31
        %s1067 = scalar_select %p1066, %s1065, 31
        %s1068 = smul.addr %s1067, 8
        %s1069 = scalar_lea.vmem %s7, %s1068
      $region60: #{tpu_custom_call.1} parent=55 // pred_fallthru
        _
    $region56: #{tpu_custom_call.1} parent=5 // pred_fallthru
      _
  $region6: #{tpu_custom_call.1} parent=0 // loop_footer
    %s19 = sadd.s32 1, %s15
  $region7: #{tpu_custom_call.1} parent=0 // loop_footer_branch
    %14 = sbr.rel target = $region3
  $region8: #{tpu_custom_call.1} parent=0 // loop_exit
    _

</llo_original>
